<compile_context>
chip_gen: v5e
topology: v5e:2x2
jax: 0.10.0
libtpu: 0.0.40
codegen_flags: <defaults>
</compile_context>

<pallas_src>
import jax
import jax.numpy as jnp
from jax.experimental import pallas as pl
from jax.experimental.pallas import tpu as pltpu


def mlp_kernel(x_ref, w1_ref, b1_ref, w2_ref, b2_ref, o_ref):
    # hidden_layer1: x @ W1 + b1, ReLU (all f32; MXU accumulates in f32).
    h = jnp.dot(x_ref[...], w1_ref[...], preferred_element_type=jnp.float32)
    h = jnp.maximum(h + b1_ref[...], 0.0)          # (tb, Hp) + (1, Hp)
    # hidden_layer2: h @ W2 + b2, sigmoid; emitted at the real output width O.
    y = jnp.dot(h, w2_ref[...], preferred_element_type=jnp.float32)
    o_ref[...] = jax.nn.sigmoid(y + b2_ref[...]).astype(o_ref.dtype)


def _round_up(x, m):
    return (x + m - 1) // m * m


def _choose_batch_tile(B, block_b):
    """Pick a batch tile (multiple of 8 rows) and prefer an even grid (>=2)."""
    tb = max(8, min(_round_up(block_b, 8), _round_up(B, 8)))
    g = pl.cdiv(B, tb)
    if B > 8 and (g < 2 or g % 2 == 1):
        # Re-size so the 'parallel' batch axis splits evenly across v7x's 2 TCs.
        g = max(2, g + (g % 2))
        tb = max(8, _round_up(pl.cdiv(B, g), 8))
    return tb


def mlp_forward(x, w1, b1, w2, b2, *, block_b=2048):
    """x: (B, in_dims); w1: (in_dims, H); b1: (1, H); w2: (H, O); b2: (1, O)."""
    B, K = x.shape
    H = w1.shape[1]
    O = w2.shape[1]

    # Lane-dense hidden dim only (tiny, exact weight pads: padded hidden cols
    # are relu(0 + 0) = 0 and multiply into zero rows of W2).  K and O are
    # deliberately left unpadded -- the levers here are HBM bytes and per-step
    # overhead, not MXU fill.
    Hp = _round_up(max(H, 128), 128)
    w1p = jnp.pad(w1, ((0, 0), (0, Hp - H)))
    b1p = jnp.pad(b1, ((0, 0), (0, Hp - H)))
    w2p = jnp.pad(w2, ((0, Hp - H), (0, 0)))

    tb = _choose_batch_tile(B, block_b)
    grid = (pl.cdiv(B, tb),)   # last tile (if partial) is masked by Pallas

    itemsize = jnp.dtype(x.dtype).itemsize
    cost = pl.CostEstimate(
        flops=2 * B * K * Hp + 2 * B * Hp * O,
        transcendentals=B * O,                       # sigmoid -> exp (real cols only)
        bytes_accessed=(x.size * itemsize
                        + w1p.size * 4 + b1p.size * 4
                        + w2p.size * 4 + b2.size * 4
                        + B * O * itemsize),
    )

    return pl.pallas_call(
        mlp_kernel,
        out_shape=jax.ShapeDtypeStruct((B, O), x.dtype),
        grid=grid,
        in_specs=[
            pl.BlockSpec((tb, K), lambda i: (i, 0)),     # x: tiled over batch
            pl.BlockSpec((K, Hp), lambda i: (0, 0)),     # W1: resident
            pl.BlockSpec((1, Hp), lambda i: (0, 0)),     # b1: resident
            pl.BlockSpec((Hp, O), lambda i: (0, 0)),     # W2: resident
            pl.BlockSpec((1, O), lambda i: (0, 0)),      # b2: resident
        ],
        out_specs=pl.BlockSpec((tb, O), lambda i: (i, 0)),
        compiler_params=pltpu.CompilerParams(
            dimension_semantics=("parallel",)),          # v7x: shard batch axis
        cost_estimate=cost,
    )(x, w1p, b1p, w2p, b2)


def init_params(key, in_dims, out_dims, layer_size=100, dtype=jnp.float32):
    """Deterministic PyTorch-nn.Linear-style init (uniform in +/- 1/sqrt(fan_in))."""
    k1, k2, k3, k4 = jax.random.split(key, 4)
    bound1 = 1.0 / jnp.sqrt(in_dims)
    bound2 = 1.0 / jnp.sqrt(layer_size)
    # stored as (in, out): transpose of torch's (out, in) weight
    w1 = jax.random.uniform(k1, (in_dims, layer_size), dtype, -bound1, bound1)
    b1 = jax.random.uniform(k2, (1, layer_size), dtype, -bound1, bound1)
    w2 = jax.random.uniform(k3, (layer_size, out_dims), dtype, -bound2, bound2)
    b2 = jax.random.uniform(k4, (1, out_dims), dtype, -bound2, bound2)
    return w1, b1, w2, b2


def _ref_f32(x, w1, b1, w2, b2):
    return jax.nn.sigmoid(jnp.maximum(x @ w1 + b1, 0.0) @ w2 + b2)


if __name__ == "__main__":
    key = jax.random.PRNGKey(0)
    kx, kx2, kp = jax.random.split(key, 3)

    in_dims, out_dims, layer_size = 32, 16, 100
    w1, b1, w2, b2 = init_params(kp, in_dims, out_dims, layer_size)

    mlp = jax.jit(mlp_forward)

    # --- small case (matches the original toy problem size) ----------------
    batch = 8
    x = jax.random.normal(kx, (batch, in_dims), jnp.float32)
    out = jax.block_until_ready(mlp(x, w1, b1, w2, b2))
    ref = _ref_f32(x, w1, b1, w2, b2)
    assert out.shape == (batch, out_dims)
    assert jnp.allclose(out, ref, atol=5e-3, rtol=5e-3)

    # --- larger batch: exercises multi-step grid + masked last tile --------
    batch2 = 1000  # deliberately not a multiple of the batch tile
    x2 = jax.random.normal(kx2, (batch2, in_dims), jnp.float32)
    out2 = jax.block_until_ready(mlp(x2, w1, b1, w2, b2))
    ref2 = _ref_f32(x2, w1, b1, w2, b2)
    assert out2.shape == (batch2, out_dims)
    assert jnp.allclose(out2, ref2, atol=5e-3, rtol=5e-3)

    print("KERNEL_OK")
</pallas_src>

<mosaic_0001>
module attributes {stable_mosaic.version = 11 : i64} {
  func.func @mlp_kernel(%arg0: i32, %arg1: memref<8x32xf32, #tpu.memory_space<vmem>>, %arg2: memref<32x128xf32, #tpu.memory_space<vmem>>, %arg3: memref<1x128xf32, #tpu.memory_space<vmem>>, %arg4: memref<128x16xf32, #tpu.memory_space<vmem>>, %arg5: memref<1x16xf32, #tpu.memory_space<vmem>>, %arg6: memref<8x16xf32, #tpu.memory_space<vmem>>) attributes {dimension_semantics = [#tpu.dimension_semantics<parallel>], iteration_bounds = array<i64: 1>, scalar_prefetch = 0 : i64, scratch_operands = 0 : i64, tpu.core_type = #tpu.core_type<tc>, window_params = [{transform_indices = @transform_0, window_bounds = array<i64: 8, 32>}, {pipeline_mode = #tpu.pipeline_mode<synchronous>, transform_indices = @transform_1, window_bounds = array<i64: 32, 128>}, {pipeline_mode = #tpu.pipeline_mode<synchronous>, transform_indices = @transform_2, window_bounds = array<i64: 1, 128>}, {pipeline_mode = #tpu.pipeline_mode<synchronous>, transform_indices = @transform_3, window_bounds = array<i64: 128, 16>}, {pipeline_mode = #tpu.pipeline_mode<synchronous>, transform_indices = @transform_4, window_bounds = array<i64: 1, 16>}, {transform_indices = @transform_5, window_bounds = array<i64: 8, 16>}]} {
    %c0 = arith.constant 0 : index
    %c0_0 = arith.constant 0 : index
    %0 = vector.load %arg1[%c0, %c0_0] : memref<8x32xf32, #tpu.memory_space<vmem>>, vector<8x32xf32>
    %c0_1 = arith.constant 0 : index
    %c0_2 = arith.constant 0 : index
    %1 = vector.load %arg2[%c0_1, %c0_2] : memref<32x128xf32, #tpu.memory_space<vmem>>, vector<32x128xf32>
    %cst = arith.constant dense<0.000000e+00> : vector<8x128xf32>
    %2 = tpu.matmul %0, %1, %cst {dimension_numbers = #tpu.dot_dimension_numbers<[1], [0], [0], [1], [0, 0, 1, 1], [], []>} : vector<8x32xf32>, vector<32x128xf32>, vector<8x128xf32> -> vector<8x128xf32>
    %c0_3 = arith.constant 0 : index
    %c0_4 = arith.constant 0 : index
    %3 = vector.load %arg3[%c0_3, %c0_4] : memref<1x128xf32, #tpu.memory_space<vmem>>, vector<1x128xf32>
    %4 = vector.broadcast %3 : vector<1x128xf32> to vector<8x128xf32>
    %5 = arith.addf %2, %4 : vector<8x128xf32>
    %cst_5 = arith.constant 0.000000e+00 : f32
    %6 = vector.broadcast %cst_5 : f32 to vector<8x128xf32>
    %7 = arith.maximumf %5, %6 : vector<8x128xf32>
    %c0_6 = arith.constant 0 : index
    %c0_7 = arith.constant 0 : index
    %8 = vector.load %arg4[%c0_6, %c0_7] : memref<128x16xf32, #tpu.memory_space<vmem>>, vector<128x16xf32>
    %cst_8 = arith.constant dense<0.000000e+00> : vector<8x16xf32>
    %9 = tpu.matmul %7, %8, %cst_8 {dimension_numbers = #tpu.dot_dimension_numbers<[1], [0], [0], [1], [0, 0, 1, 1], [], []>} : vector<8x128xf32>, vector<128x16xf32>, vector<8x16xf32> -> vector<8x16xf32>
    %c0_9 = arith.constant 0 : index
    %c0_10 = arith.constant 0 : index
    %10 = vector.load %arg5[%c0_9, %c0_10] : memref<1x16xf32, #tpu.memory_space<vmem>>, vector<1x16xf32>
    %11 = vector.broadcast %10 : vector<1x16xf32> to vector<8x16xf32>
    %12 = arith.addf %9, %11 : vector<8x16xf32>
    %13 = arith.negf %12 : vector<8x16xf32>
    %14 = math.exp %13 : vector<8x16xf32>
    %cst_11 = arith.constant 1.000000e+00 : f32
    %15 = vector.broadcast %cst_11 : f32 to vector<8x16xf32>
    %16 = arith.addf %15, %14 : vector<8x16xf32>
    %17 = arith.divf %15, %16 : vector<8x16xf32>
    %c0_12 = arith.constant 0 : index
    %c0_13 = arith.constant 0 : index
    %18 = vector.load %arg6[%c0_12, %c0_13] : memref<8x16xf32, #tpu.memory_space<vmem>>, vector<8x16xf32>
    tpu.vector_store %arg6[%c0_12, %c0_13], %17 {strides = array<i32>} : memref<8x16xf32, #tpu.memory_space<vmem>>, vector<8x16xf32>,
    return
  }
  func.func @transform_0(%arg0: i32) -> (i32, i32) {
    %c0_i32 = arith.constant 0 : i32
    %c0_i32_0 = arith.constant 0 : i32
    return %arg0, %c0_i32 : i32, i32
  }
  func.func @transform_1(%arg0: i32) -> (i32, i32) {
    %c0_i32 = arith.constant 0 : i32
    %c0_i32_0 = arith.constant 0 : i32
    %c0_i32_1 = arith.constant 0 : i32
    return %c0_i32, %c0_i32_0 : i32, i32
  }
  func.func @transform_2(%arg0: i32) -> (i32, i32) {
    %c0_i32 = arith.constant 0 : i32
    %c0_i32_0 = arith.constant 0 : i32
    %c0_i32_1 = arith.constant 0 : i32
    return %c0_i32, %c0_i32_0 : i32, i32
  }
  func.func @transform_3(%arg0: i32) -> (i32, i32) {
    %c0_i32 = arith.constant 0 : i32
    %c0_i32_0 = arith.constant 0 : i32
    %c0_i32_1 = arith.constant 0 : i32
    return %c0_i32, %c0_i32_0 : i32, i32
  }
  func.func @transform_4(%arg0: i32) -> (i32, i32) {
    %c0_i32 = arith.constant 0 : i32
    %c0_i32_0 = arith.constant 0 : i32
    %c0_i32_1 = arith.constant 0 : i32
    return %c0_i32, %c0_i32_0 : i32, i32
  }
  func.func @transform_5(%arg0: i32) -> (i32, i32) {
    %c0_i32 = arith.constant 0 : i32
    %c0_i32_0 = arith.constant 0 : i32
    return %arg0, %c0_i32 : i32, i32
  }
}

</mosaic_0001>

<llo_original>
// kernel: mlp_forward.1
$region0: #{mlp_forward.1}
  #allocation0 [shape = 'u32[]', space=smem, size = 0x4, offset = 0x4, fixed_abs, tag = 'smem constant byte address 0x4 - core index']
  #allocation1 [shape = 'u32[72,128]{1,0:T(1,128)}', space=vmem, size = 0x9000, scoped, tag = 'internal scratch']
  %s0 = inlined_call_operand.vmem [shape: f32[8,32], index: 0, kind: input, shape index: {}]
  %s1 = inlined_call_operand.vmem [shape: f32[32,128], index: 1, kind: input, shape index: {}]
  %s2 = inlined_call_operand.vmem [shape: f32[1,128], index: 2, kind: input, shape index: {}]
  %s3 = inlined_call_operand.vmem [shape: f32[128,16], index: 3, kind: input, shape index: {}]
  %s4 = inlined_call_operand.vmem [shape: f32[1,16], index: 4, kind: input, shape index: {}]
  %s5 = inlined_call_operand.hbm [shape: f32[8,16], index: 5, kind: output, shape index: {}]
  %s6 = sld [smem:[#allocation0]]
  $region30: #{mlp_forward.1} parent=0
    _
  %s8 = ssub.s32 1, %s6
  %s9 = scalar_select 0, %s8, %s6
  $region1: #{mlp_forward.1} parent=0
    #allocation2 [shape = 'u8[4096]{0}', space=vmem, size = 0x1000, scoped, tag = 'output window, operand 0, single buffered']
    #allocation3 [shape = 's32[1]{0}', space=sflag, size = 0x4, scoped, tag = 'scoped memory for mlp_forward.1']
    %10 = vsyncpa [#allocation3], 0
    // Predicated region
    $region2: #{mlp_forward.1} parent=1 // pred_check
      _
    $region3: #{mlp_forward.1} parent=1 // pred_check_branch
      %12 = sbr.rel (0) target = $region5
    $region4: #{mlp_forward.1} parent=1 // pred_region
      _
    $region5: #{mlp_forward.1} parent=1 // pred_fallthru
      _
    // Predicated region
    $region6: #{mlp_forward.1} parent=1 // pred_check
      _
    $region7: #{mlp_forward.1} parent=1 // pred_check_branch
      %14 = sbr.rel (0) target = $region9
    $region8: #{mlp_forward.1} parent=1 // pred_region
      _
    $region9: #{mlp_forward.1} parent=1 // pred_fallthru
      _
    // Predicated region
    $region10: #{mlp_forward.1} parent=1 // pred_check
      _
    $region11: #{mlp_forward.1} parent=1 // pred_check_branch
      %16 = sbr.rel (0) target = $region13
    $region12: #{mlp_forward.1} parent=1 // pred_region
      _
    $region13: #{mlp_forward.1} parent=1 // pred_fallthru
      _
    // Predicated region
    $region14: #{mlp_forward.1} parent=1 // pred_check
      _
    $region15: #{mlp_forward.1} parent=1 // pred_check_branch
      %18 = sbr.rel (0) target = $region17
    $region16: #{mlp_forward.1} parent=1 // pred_region
      _
    $region17: #{mlp_forward.1} parent=1 // pred_fallthru
      _
    // Predicated region
    $region18: #{mlp_forward.1} parent=1 // pred_check
      _
    $region19: #{mlp_forward.1} parent=1 // pred_check_branch
      %20 = sbr.rel (0) target = $region21
    $region20: #{mlp_forward.1} parent=1 // pred_region
      _
    $region21: #{mlp_forward.1} parent=1 // pred_fallthru
      _
    %v21 = vld [vmem:[%s0] sm:$0xff]
    %v22 = vld [vmem:[%s1] sm:$0xff]
    %v23 = vld [vmem:[%s1 + $0x8] sm:$0xff]
    %v24 = vld [vmem:[%s1 + $0x10] sm:$0xff]
    %v25 = vld [vmem:[%s1 + $0x18] sm:$0xff]
    %v26 = vld [vmem:[%s2] sm:$0x1]
    %v28 = vperm.slane %v26, 0
    %vm30 = vcmask 261120
    %v32 = vsel %vm30, %v21, 0
    %34 = vmatpush.msra.mxu0 0.0
    %35 = vmatpush.msra.mxu0 0.0
    %36 = vmatpush.msra.mxu0 0.0
    %37 = vmatpush.msra.mxu0 0.0
    %38 = vmatpush.msra.mxu0 0.0
    %39 = vmatpush.msra.mxu0 0.0
    %40 = vmatpush.msra.mxu0 0.0
    %41 = vmatpush.msra.mxu0 0.0
    %42 = vmatpush.msra.mxu0 0.0
    %43 = vmatpush.msra.mxu0 0.0
    %44 = vmatpush.msra.mxu0 0.0
    %45 = vmatpush.msra.mxu0 0.0
    %46 = vmatpush.msra.mxu0 %v25
    %47 = vmatpush.msra.mxu0 %v24
    %48 = vmatpush.msra.mxu0 %v23
    %49 = vmatpush.msra.mxu0 %v22
    %50 = vmatmul.f32.gmra.mxu0 %v32
    %v51 = vpop.f32.mrf.mxu0
    %v52 = vadd.f32 %v28, %v51
    %53 = vdwg.mxu0
    %v54 = vmax.f32 %v52, 0.0
    %v55 = vld [vmem:[%s3] sm:$0xff]
    %v56 = vld [vmem:[%s3 + $0x8] sm:$0xff]
    %v57 = vld [vmem:[%s3 + $0x10] sm:$0xff]
    %v58 = vld [vmem:[%s3 + $0x18] sm:$0xff]
    %v59 = vld [vmem:[%s3 + $0x20] sm:$0xff]
    %v60 = vld [vmem:[%s3 + $0x28] sm:$0xff]
    %v61 = vld [vmem:[%s3 + $0x30] sm:$0xff]
    %v62 = vld [vmem:[%s3 + $0x38] sm:$0xff]
    %v63 = vld [vmem:[%s3 + $0x40] sm:$0xff]
    %v64 = vld [vmem:[%s3 + $0x48] sm:$0xff]
    %v65 = vld [vmem:[%s3 + $0x50] sm:$0xff]
    %v66 = vld [vmem:[%s3 + $0x58] sm:$0xff]
    %v67 = vld [vmem:[%s3 + $0x60] sm:$0xff]
    %v68 = vld [vmem:[%s3 + $0x68] sm:$0xff]
    %v69 = vld [vmem:[%s3 + $0x70] sm:$0xff]
    %v70 = vld [vmem:[%s3 + $0x78] sm:$0xff]
    %v71 = vld [vmem:[%s4] sm:$0x1]
    %v73 = vperm.slane %v71, 0
    %75 = vmatpush.msra.mxu0 %v70
    %76 = vmatpush.msra.mxu0 %v69
    %77 = vmatpush.msra.mxu0 %v68
    %78 = vmatpush.msra.mxu0 %v67
    %79 = vmatpush.msra.mxu0 %v66
    %80 = vmatpush.msra.mxu0 %v65
    %81 = vmatpush.msra.mxu0 %v64
    %82 = vmatpush.msra.mxu0 %v63
    %83 = vmatpush.msra.mxu0 %v62
    %84 = vmatpush.msra.mxu0 %v61
    %85 = vmatpush.msra.mxu0 %v60
    %86 = vmatpush.msra.mxu0 %v59
    %87 = vmatpush.msra.mxu0 %v58
    %88 = vmatpush.msra.mxu0 %v57
    %89 = vmatpush.msra.mxu0 %v56
    %90 = vmatpush.msra.mxu0 %v55
    %91 = vmatmul.f32.gmra.mxu0 %v54
    %v92 = vpop.f32.mrf.mxu0
    %v93 = vadd.f32 %v73, %v92
    %94 = vdwg.mxu0
    %v95 = vxor.u32 %v93, 2147483648
    %v96 = vmul.f32 %v95, 1.442695
    %v97 = vpow.pop %v96
    %v98 = vadd.f32 %v97, 1.0
    %v99 = vrcp.pop %v98
    %v100 = vmul.f32 %v98, %v99
    %v101 = vsub.f32 1.0, %v100
    %v102 = vmul.f32 %v99, %v101
    %v103 = vadd.f32 %v99, %v102
    %vm104 = vweird.f32 %v98
    %vm105 = vweird.f32 %v99
    %vm106 = vmor %vm104, %vm105
    %v107 = vsel %vm106, %v99, %v103
    %v108 = vand.u32 2147483647, %v98
    %vm109 = vcmp.eq.f32.partialorder %v108, 8.507059e+37
    %v110 = vand.u32 %v98, 2147483648
    %v111 = vor.u32 1.1754944e-38, %v110
    %v112 = vsel %vm109, %v111, %v107
    %v113 = vmul.f32 1.0, %v112
    %vm114 = vcmask 130048
    %115 = vst.msk [vmem:[#allocation2] sm:$0xff] %vm114, %v113
    // Predicated region
    $region22: #{mlp_forward.1} parent=1 // pred_check
      _
    $region23: #{mlp_forward.1} parent=1 // pred_check_branch
      %117 = sbr.rel (0) target = $region25
    $region24: #{mlp_forward.1} parent=1 // pred_region
      %119 = vsyncadd [#allocation3], 0
      %s121 = sshll.u32 [#allocation2], 4
      %s122 = int_to_ptr.vmem [resolvable:$true] %s121
      %s123 = sshll.u32 %s5, 4
      %s124 = int_to_ptr.hbm [resolvable:$true] %s123
      %126 = dma.vmem_to_hbm [thread:$0]  %s122, 128, %s124, [#allocation3]
    $region25: #{mlp_forward.1} parent=1 // pred_fallthru
      _
    // Predicated region
    $region26: #{mlp_forward.1} parent=1 // pred_check
      _
    $region27: #{mlp_forward.1} parent=1 // pred_check_branch
      %128 = sbr.rel (0) target = $region29
    $region28: #{mlp_forward.1} parent=1 // pred_region
      %130 = dma.done [#allocation3], 128
    $region29: #{mlp_forward.1} parent=1 // pred_fallthru
      _
    %131 = vsyncpa [#allocation3], 1

</llo_original>
